<compile_context>
chip_gen: v7x
topology: tpu7x:2x2x1
jax: 0.10.0
libtpu: 0.0.40
codegen_flags: <defaults>
</compile_context>

<pallas_src>
import math

import jax
import jax.numpy as jnp
import numpy as np
from jax.experimental import pallas as pl
from jax.experimental.pallas import tpu as pltpu


def _round_up(x, m):
    return (x + m - 1) // m * m


# ----------------------------- Pallas kernel --------------------------------
def bilstm_cell_kernel(gx_ref, whh_ref, out_ref):
    """Recurrent part of one BiLSTM direction (grid axis 0 = direction).

    gx_ref : (T, B, 4H) f32   precomputed x_t @ Wih + (b_ih + b_hh), gate order
                              (i, f, o, g); time already in *walk* order (the
                              backward direction is pre-flipped by the wrapper).
    whh_ref: (H, 4H)    bf16  recurrent weights, same gate order.
    out_ref: (T, B, H)  bf16  hidden states of this direction (in walk order).
    """
    T, B, G = gx_ref.shape
    H = G // 4
    Whh = whh_ref[...]                                     # (H, 4H) bf16, VMEM resident

    # Hoisted out of the time loop (JAX does not CSE broadcast/iota).
    lane = jax.lax.broadcasted_iota(jnp.int32, (B, G), 1)
    sig_lanes = lane < 3 * H                               # i,f,o -> sigmoid ; g -> tanh

    def step(t, carry):
        h, c = carry                                       # h (B,H) bf16, c (B,H) f32
        # Only the K=H recurrent matmul sits on the serial critical path.
        g = gx_ref[t] + jnp.dot(h, Whh, preferred_element_type=jnp.float32)   # (B,4H) f32
        a = jnp.where(sig_lanes, jax.nn.sigmoid(g), jnp.tanh(g))
        i_g = a[:, 0 * H:1 * H]
        f_g = a[:, 1 * H:2 * H]
        o_g = a[:, 2 * H:3 * H]
        g_g = a[:, 3 * H:4 * H]
        c_new = f_g * c + i_g * g_g
        h_new = o_g * jnp.tanh(c_new)
        out_ref[t] = h_new.astype(out_ref.dtype)           # static, aligned store
        return h_new.astype(jnp.bfloat16), c_new

    h0 = jnp.zeros((B, H), jnp.bfloat16)
    c0 = jnp.zeros((B, H), jnp.float32)
    # Full unroll only at small T; partial unroll keeps LLO visibility without
    # blowing up code size at production sequence lengths.
    unroll = True if T <= 32 else 8
    jax.lax.fori_loop(0, T, step, (h0, c0), unroll=unroll)


# ------------------------------- wrapper -------------------------------------
@jax.jit
def mask_lstm(x, seq_lens, Wih, Whh, b):
    """x: (B,T,Din) f32; seq_lens: (B,) i32;
    Wih: (2,Din,4H) bf16; Whh: (2,H,4H) bf16; b: (2,1,4H) f32
    -> (B, T, 2H) f32  (forward | backward), masked like the PyTorch module."""
    B, T, Din = x.shape
    H = Whh.shape[1]
    Bp = _round_up(B, 8)                                   # sublane-align the batch

    mask_bt = (jnp.arange(T)[None, :] < seq_lens[:, None]).astype(x.dtype)    # (B,T)

    # ---- pre-phase (XLA): everything that has no serial dependence ----------
    # input mask + bf16 cast fuse into the (B,T,Din)->(T,B,Din) transpose.
    xm = x * mask_bt[:, :, None]
    xt = jnp.transpose(xm, (1, 0, 2)).astype(jnp.bfloat16)                    # (T,B,Din)
    xt = jnp.pad(xt, ((0, 0), (0, Bp - B), (0, 0)))                           # (T,Bp,Din)

    # Hoisted input projection: one stacked (T*Bp, Din) x (Din, 2*4H) matmul
    # covering both directions, bias folded in (cuDNN-style restructure).
    gx = jnp.einsum("tbd,kdg->ktbg", xt, Wih,
                    preferred_element_type=jnp.float32) + b[:, None]          # (2,T,Bp,4H)
    # Pre-flip the backward direction so the kernel's time index is static.
    gx = jnp.stack([gx[0], gx[1][::-1]], axis=0)

    out = pl.pallas_call(
        bilstm_cell_kernel,
        grid=(2,),                                                 # direction axis
        out_shape=jax.ShapeDtypeStruct((2, T, Bp, H), jnp.bfloat16),
        in_specs=[
            pl.BlockSpec((None, T, Bp, 4 * H), lambda d: (d, 0, 0, 0)),
            pl.BlockSpec((None, H, 4 * H), lambda d: (d, 0, 0)),
        ],
        out_specs=pl.BlockSpec((None, T, Bp, H), lambda d: (d, 0, 0, 0)),
        compiler_params=pltpu.CompilerParams(
            dimension_semantics=("parallel",),        # TODO(synk): CORE_PARALLEL on v7x
            vmem_limit_bytes=64 * 1024 * 1024,
        ),
    )(gx, Whh)

    # Un-flip backward, drop batch padding, concat features, back to batch-major,
    # cast to f32 and re-apply the output mask (single fused XLA pass).
    hf = out[0, :, :B]                                     # (T,B,H) bf16
    hb = out[1, ::-1, :B]                                  # (T,B,H) bf16, un-flipped
    h_cat = jnp.concatenate([hf, hb], axis=-1)             # (T,B,2H)
    h_bt = jnp.transpose(h_cat, (1, 0, 2)).astype(jnp.float32)                # (B,T,2H)
    return h_bt * mask_bt[:, :, None]


# ----------------------- deterministic parameter init ------------------------
def init_params(key, in_dim, hidden):
    """Mimics nn.LSTM's U(-1/sqrt(H), 1/sqrt(H)) init; PyTorch gate order (i,f,g,o)."""
    k = 1.0 / math.sqrt(hidden)
    ks = jax.random.split(key, 8)
    u = lambda kk, shape: jax.random.uniform(kk, shape, jnp.float32, -k, k)

    w_ih_f = u(ks[0], (4 * hidden, in_dim))
    w_hh_f = u(ks[1], (4 * hidden, hidden))
    b_ih_f = u(ks[2], (4 * hidden,))
    b_hh_f = u(ks[3], (4 * hidden,))
    w_ih_b = u(ks[4], (4 * hidden, in_dim))
    w_hh_b = u(ks[5], (4 * hidden, hidden))
    b_ih_b = u(ks[6], (4 * hidden,))
    b_hh_b = u(ks[7], (4 * hidden,))

    return {
        "wih_f": w_ih_f.T,                               # (Din, 4H)
        "whh_f": w_hh_f.T,                               # (H, 4H)
        "b_f": (b_ih_f + b_hh_f).reshape(1, 4 * hidden),
        "wih_b": w_ih_b.T,
        "whh_b": w_hh_b.T,
        "b_b": (b_ih_b + b_hh_b).reshape(1, 4 * hidden),
    }


def prepare_kernel_params(p):
    """Stack directions, permute gate columns (i,f,g,o)->(i,f,o,g), cast weights bf16.
    Wih is kept separate from Whh so the x-projection can be hoisted out of the
    recurrence into one big batched matmul over all timesteps + both directions."""
    H = p["whh_f"].shape[0]
    perm = np.concatenate([np.arange(0, 2 * H),          # i, f
                           np.arange(3 * H, 4 * H),      # o
                           np.arange(2 * H, 3 * H)])     # g
    r = lambda w: w[..., perm]
    Wih = jnp.stack([r(p["wih_f"]), r(p["wih_b"])], axis=0).astype(jnp.bfloat16)  # (2,Din,4H)
    Whh = jnp.stack([r(p["whh_f"]), r(p["whh_b"])], axis=0).astype(jnp.bfloat16)  # (2,H,4H)
    b = jnp.stack([r(p["b_f"]), r(p["b_b"])], axis=0)                             # (2,1,4H) f32
    return Wih, Whh, b


# ---------------------------- pure-JAX reference -----------------------------
def mask_lstm_ref(x, seq_lens, p, bf16_matmul=False):
    B, T, Din = x.shape
    H = p["whh_f"].shape[0]
    mm_dt = jnp.bfloat16 if bf16_matmul else jnp.float32
    mask = (jnp.arange(T)[None, :] < seq_lens[:, None]).astype(jnp.float32)  # (B,T)
    xm = x * mask[:, :, None]

    def cell(params, carry, x_t):
        wih, whh, b = params
        h, c = carry
        g = (jnp.dot(x_t.astype(mm_dt), wih.astype(mm_dt),
                     preferred_element_type=jnp.float32)
             + jnp.dot(h.astype(mm_dt), whh.astype(mm_dt),
                       preferred_element_type=jnp.float32)
             + b)
        i = jax.nn.sigmoid(g[:, :H])
        f = jax.nn.sigmoid(g[:, H:2 * H])
        gg = jnp.tanh(g[:, 2 * H:3 * H])
        o = jax.nn.sigmoid(g[:, 3 * H:])
        c = f * c + i * gg
        h = o * jnp.tanh(c)
        return (h, c), h

    def run(params, xs):
        z = jnp.zeros((B, H), jnp.float32)
        _, hs = jax.lax.scan(lambda cr, xt_: cell(params, cr, xt_), (z, z), xs)
        if bf16_matmul:
            hs = hs.astype(jnp.bfloat16).astype(jnp.float32)   # kernel stores h in bf16
        return hs

    xt = jnp.transpose(xm, (1, 0, 2))
    hf = run((p["wih_f"], p["whh_f"], p["b_f"]), xt)
    hb = run((p["wih_b"], p["whh_b"], p["b_b"]), xt[::-1])[::-1]
    Hc = jnp.transpose(jnp.concatenate([hf, hb], axis=-1), (1, 0, 2))
    return Hc * mask[:, :, None]


# ---------------------------------- main --------------------------------------
if __name__ == "__main__":
    B, T, IN_DIM, HIDDEN = 2, 8, 16, 32

    key = jax.random.PRNGKey(0)
    k_x, k_p = jax.random.split(key)
    x = jax.random.normal(k_x, (B, T, IN_DIM), jnp.float32)
    seq_lens = jnp.array([5, 8], dtype=jnp.int32)

    params = init_params(k_p, IN_DIM, HIDDEN)
    Wih, Whh, b = prepare_kernel_params(params)

    out = mask_lstm(x, seq_lens, Wih, Whh, b)
    out = jax.block_until_ready(out)
    assert out.shape == (B, T, 2 * HIDDEN)

    # apples-to-apples check (reference also uses bf16 matmul operands + bf16 h store)
    ref_bf16 = mask_lstm_ref(x, seq_lens, params, bf16_matmul=True)
    np.testing.assert_allclose(np.asarray(out), np.asarray(ref_bf16),
                               atol=5e-3, rtol=5e-3)
    # semantic sanity vs. full-f32 reference (bf16 error compounds over T steps)
    ref_f32 = mask_lstm_ref(x, seq_lens, params, bf16_matmul=False)
    np.testing.assert_allclose(np.asarray(out), np.asarray(ref_f32),
                               atol=5e-2, rtol=5e-2)
    # masked (padded) timesteps must be exactly zero
    np.testing.assert_array_equal(np.asarray(out[0, 5:]), 0.0)

    print("KERNEL_OK")
</pallas_src>

<mosaic_0001>
module attributes {stable_mosaic.version = 11 : i64} {
  func.func @bilstm_cell_kernel(%arg0: i32, %arg1: memref<1x8x8x128xf32, #tpu.memory_space<vmem>>, %arg2: memref<1x32x128xbf16, #tpu.memory_space<vmem>>, %arg3: memref<1x8x8x32xbf16, #tpu.memory_space<vmem>>) attributes {dimension_semantics = [#tpu.dimension_semantics<parallel>], iteration_bounds = array<i64: 2>, scalar_prefetch = 0 : i64, scratch_operands = 0 : i64, tpu.core_type = #tpu.core_type<tc>, window_params = [{transform_indices = @transform_0, window_bounds = array<i64: 1, 8, 8, 128>}, {transform_indices = @transform_1, window_bounds = array<i64: 1, 32, 128>}, {transform_indices = @transform_2, window_bounds = array<i64: 1, 8, 8, 32>}]} {
    %c0 = arith.constant 0 : index
    %c0_0 = arith.constant 0 : index
    %c0_1 = arith.constant 0 : index
    %0 = vector.load %arg2[%c0, %c0_0, %c0_1] : memref<1x32x128xbf16, #tpu.memory_space<vmem>>, vector<1x32x128xbf16>
    %1 = vector.shape_cast %0 : vector<1x32x128xbf16> to vector<32x128xbf16>
    %2 = tpu.iota {dimensions = array<i32: 1>} : vector<8x128xi32>
    %c96_i32 = arith.constant 96 : i32
    %3 = vector.broadcast %c96_i32 : i32 to vector<8x128xi32>
    %4 = arith.cmpi slt, %2, %3 : vector<8x128xi32>
    %cst = arith.constant 0.000000e+00 : bf16
    %5 = vector.broadcast %cst : bf16 to vector<8x32xbf16>
    %cst_2 = arith.constant 0.000000e+00 : f32
    %6 = vector.broadcast %cst_2 : f32 to vector<8x32xf32>
    %c0_i32 = arith.constant 0 : i32
    %c0_3 = arith.constant 0 : index
    %7 = arith.index_cast %c0_i32 : i32 to index
    %c0_4 = arith.constant 0 : index
    %c0_5 = arith.constant 0 : index
    %8 = vector.load %arg1[%c0_3, %7, %c0_4, %c0_5] : memref<1x8x8x128xf32, #tpu.memory_space<vmem>>, vector<1x1x8x128xf32>
    %9 = vector.shape_cast %8 : vector<1x1x8x128xf32> to vector<8x128xf32>
    %cst_6 = arith.constant dense<0.000000e+00> : vector<8x128xf32>
    %10 = tpu.matmul %5, %1, %cst_6 {dimension_numbers = #tpu.dot_dimension_numbers<[1], [0], [0], [1], [0, 0, 1, 1], [], []>} : vector<8x32xbf16>, vector<32x128xbf16>, vector<8x128xf32> -> vector<8x128xf32>
    %11 = arith.addf %9, %10 : vector<8x128xf32>
    %12 = arith.negf %11 : vector<8x128xf32>
    %13 = math.exp %12 : vector<8x128xf32>
    %cst_7 = arith.constant 1.000000e+00 : f32
    %14 = vector.broadcast %cst_7 : f32 to vector<8x128xf32>
    %15 = arith.addf %14, %13 : vector<8x128xf32>
    %16 = arith.divf %14, %15 : vector<8x128xf32>
    %17 = math.tanh %11 : vector<8x128xf32>
    %18 = arith.select %4, %16, %17 : vector<8x128xi1>, vector<8x128xf32>
    %19 = vector.extract_strided_slice %18 {offsets = [0, 0], sizes = [8, 32], strides = [1, 1]} : vector<8x128xf32> to vector<8x32xf32>
    %20 = vector.extract_strided_slice %18 {offsets = [0, 32], sizes = [8, 32], strides = [1, 1]} : vector<8x128xf32> to vector<8x32xf32>
    %21 = vector.extract_strided_slice %18 {offsets = [0, 64], sizes = [8, 32], strides = [1, 1]} : vector<8x128xf32> to vector<8x32xf32>
    %22 = vector.extract_strided_slice %18 {offsets = [0, 96], sizes = [8, 32], strides = [1, 1]} : vector<8x128xf32> to vector<8x32xf32>
    %23 = arith.mulf %20, %6 : vector<8x32xf32>
    %24 = arith.mulf %19, %22 : vector<8x32xf32>
    %25 = arith.addf %23, %24 : vector<8x32xf32>
    %26 = math.tanh %25 : vector<8x32xf32>
    %27 = arith.mulf %21, %26 : vector<8x32xf32>
    %28 = arith.truncf %27 : vector<8x32xf32> to vector<8x32xbf16>
    %c0_8 = arith.constant 0 : index
    %29 = arith.index_cast %c0_i32 : i32 to index
    %c0_9 = arith.constant 0 : index
    %c0_10 = arith.constant 0 : index
    %30 = vector.load %arg3[%c0_8, %29, %c0_9, %c0_10] : memref<1x8x8x32xbf16, #tpu.memory_space<vmem>>, vector<1x1x8x32xbf16>
    %31 = vector.shape_cast %30 : vector<1x1x8x32xbf16> to vector<8x32xbf16>
    %32 = vector.shape_cast %28 : vector<8x32xbf16> to vector<1x1x8x32xbf16>
    tpu.vector_store %arg3[%c0_8, %29, %c0_9, %c0_10], %32 {strides = array<i32>} : memref<1x8x8x32xbf16, #tpu.memory_space<vmem>>, vector<1x1x8x32xbf16>,
    %33 = arith.truncf %27 : vector<8x32xf32> to vector<8x32xbf16>
    %c1_i32 = arith.constant 1 : i32
    %c0_11 = arith.constant 0 : index
    %34 = arith.index_cast %c1_i32 : i32 to index
    %c0_12 = arith.constant 0 : index
    %c0_13 = arith.constant 0 : index
    %35 = vector.load %arg1[%c0_11, %34, %c0_12, %c0_13] : memref<1x8x8x128xf32, #tpu.memory_space<vmem>>, vector<1x1x8x128xf32>
    %36 = vector.shape_cast %35 : vector<1x1x8x128xf32> to vector<8x128xf32>
    %cst_14 = arith.constant dense<0.000000e+00> : vector<8x128xf32>
    %37 = tpu.matmul %33, %1, %cst_14 {dimension_numbers = #tpu.dot_dimension_numbers<[1], [0], [0], [1], [0, 0, 1, 1], [], []>} : vector<8x32xbf16>, vector<32x128xbf16>, vector<8x128xf32> -> vector<8x128xf32>
    %38 = arith.addf %36, %37 : vector<8x128xf32>
    %39 = arith.negf %38 : vector<8x128xf32>
    %40 = math.exp %39 : vector<8x128xf32>
    %cst_15 = arith.constant 1.000000e+00 : f32
    %41 = vector.broadcast %cst_15 : f32 to vector<8x128xf32>
    %42 = arith.addf %41, %40 : vector<8x128xf32>
    %43 = arith.divf %41, %42 : vector<8x128xf32>
    %44 = math.tanh %38 : vector<8x128xf32>
    %45 = arith.select %4, %43, %44 : vector<8x128xi1>, vector<8x128xf32>
    %46 = vector.extract_strided_slice %45 {offsets = [0, 0], sizes = [8, 32], strides = [1, 1]} : vector<8x128xf32> to vector<8x32xf32>
    %47 = vector.extract_strided_slice %45 {offsets = [0, 32], sizes = [8, 32], strides = [1, 1]} : vector<8x128xf32> to vector<8x32xf32>
    %48 = vector.extract_strided_slice %45 {offsets = [0, 64], sizes = [8, 32], strides = [1, 1]} : vector<8x128xf32> to vector<8x32xf32>
    %49 = vector.extract_strided_slice %45 {offsets = [0, 96], sizes = [8, 32], strides = [1, 1]} : vector<8x128xf32> to vector<8x32xf32>
    %50 = arith.mulf %47, %25 : vector<8x32xf32>
    %51 = arith.mulf %46, %49 : vector<8x32xf32>
    %52 = arith.addf %50, %51 : vector<8x32xf32>
    %53 = math.tanh %52 : vector<8x32xf32>
    %54 = arith.mulf %48, %53 : vector<8x32xf32>
    %55 = arith.truncf %54 : vector<8x32xf32> to vector<8x32xbf16>
    %c0_16 = arith.constant 0 : index
    %56 = arith.index_cast %c1_i32 : i32 to index
    %c0_17 = arith.constant 0 : index
    %c0_18 = arith.constant 0 : index
    %57 = vector.load %arg3[%c0_16, %56, %c0_17, %c0_18] : memref<1x8x8x32xbf16, #tpu.memory_space<vmem>>, vector<1x1x8x32xbf16>
    %58 = vector.shape_cast %57 : vector<1x1x8x32xbf16> to vector<8x32xbf16>
    %59 = vector.shape_cast %55 : vector<8x32xbf16> to vector<1x1x8x32xbf16>
    tpu.vector_store %arg3[%c0_16, %56, %c0_17, %c0_18], %59 {strides = array<i32>} : memref<1x8x8x32xbf16, #tpu.memory_space<vmem>>, vector<1x1x8x32xbf16>,
    %60 = arith.truncf %54 : vector<8x32xf32> to vector<8x32xbf16>
    %c2_i32 = arith.constant 2 : i32
    %c0_19 = arith.constant 0 : index
    %61 = arith.index_cast %c2_i32 : i32 to index
    %c0_20 = arith.constant 0 : index
    %c0_21 = arith.constant 0 : index
    %62 = vector.load %arg1[%c0_19, %61, %c0_20, %c0_21] : memref<1x8x8x128xf32, #tpu.memory_space<vmem>>, vector<1x1x8x128xf32>
    %63 = vector.shape_cast %62 : vector<1x1x8x128xf32> to vector<8x128xf32>
    %cst_22 = arith.constant dense<0.000000e+00> : vector<8x128xf32>
    %64 = tpu.matmul %60, %1, %cst_22 {dimension_numbers = #tpu.dot_dimension_numbers<[1], [0], [0], [1], [0, 0, 1, 1], [], []>} : vector<8x32xbf16>, vector<32x128xbf16>, vector<8x128xf32> -> vector<8x128xf32>
    %65 = arith.addf %63, %64 : vector<8x128xf32>
    %66 = arith.negf %65 : vector<8x128xf32>
    %67 = math.exp %66 : vector<8x128xf32>
    %cst_23 = arith.constant 1.000000e+00 : f32
    %68 = vector.broadcast %cst_23 : f32 to vector<8x128xf32>
    %69 = arith.addf %68, %67 : vector<8x128xf32>
    %70 = arith.divf %68, %69 : vector<8x128xf32>
    %71 = math.tanh %65 : vector<8x128xf32>
    %72 = arith.select %4, %70, %71 : vector<8x128xi1>, vector<8x128xf32>
    %73 = vector.extract_strided_slice %72 {offsets = [0, 0], sizes = [8, 32], strides = [1, 1]} : vector<8x128xf32> to vector<8x32xf32>
    %74 = vector.extract_strided_slice %72 {offsets = [0, 32], sizes = [8, 32], strides = [1, 1]} : vector<8x128xf32> to vector<8x32xf32>
    %75 = vector.extract_strided_slice %72 {offsets = [0, 64], sizes = [8, 32], strides = [1, 1]} : vector<8x128xf32> to vector<8x32xf32>
    %76 = vector.extract_strided_slice %72 {offsets = [0, 96], sizes = [8, 32], strides = [1, 1]} : vector<8x128xf32> to vector<8x32xf32>
    %77 = arith.mulf %74, %52 : vector<8x32xf32>
    %78 = arith.mulf %73, %76 : vector<8x32xf32>
    %79 = arith.addf %77, %78 : vector<8x32xf32>
    %80 = math.tanh %79 : vector<8x32xf32>
    %81 = arith.mulf %75, %80 : vector<8x32xf32>
    %82 = arith.truncf %81 : vector<8x32xf32> to vector<8x32xbf16>
    %c0_24 = arith.constant 0 : index
    %83 = arith.index_cast %c2_i32 : i32 to index
    %c0_25 = arith.constant 0 : index
    %c0_26 = arith.constant 0 : index
    %84 = vector.load %arg3[%c0_24, %83, %c0_25, %c0_26] : memref<1x8x8x32xbf16, #tpu.memory_space<vmem>>, vector<1x1x8x32xbf16>
    %85 = vector.shape_cast %84 : vector<1x1x8x32xbf16> to vector<8x32xbf16>
    %86 = vector.shape_cast %82 : vector<8x32xbf16> to vector<1x1x8x32xbf16>
    tpu.vector_store %arg3[%c0_24, %83, %c0_25, %c0_26], %86 {strides = array<i32>} : memref<1x8x8x32xbf16, #tpu.memory_space<vmem>>, vector<1x1x8x32xbf16>,
    %87 = arith.truncf %81 : vector<8x32xf32> to vector<8x32xbf16>
    %c3_i32 = arith.constant 3 : i32
    %c0_27 = arith.constant 0 : index
    %88 = arith.index_cast %c3_i32 : i32 to index
    %c0_28 = arith.constant 0 : index
    %c0_29 = arith.constant 0 : index
    %89 = vector.load %arg1[%c0_27, %88, %c0_28, %c0_29] : memref<1x8x8x128xf32, #tpu.memory_space<vmem>>, vector<1x1x8x128xf32>
    %90 = vector.shape_cast %89 : vector<1x1x8x128xf32> to vector<8x128xf32>
    %cst_30 = arith.constant dense<0.000000e+00> : vector<8x128xf32>
    %91 = tpu.matmul %87, %1, %cst_30 {dimension_numbers = #tpu.dot_dimension_numbers<[1], [0], [0], [1], [0, 0, 1, 1], [], []>} : vector<8x32xbf16>, vector<32x128xbf16>, vector<8x128xf32> -> vector<8x128xf32>
    %92 = arith.addf %90, %91 : vector<8x128xf32>
    %93 = arith.negf %92 : vector<8x128xf32>
    %94 = math.exp %93 : vector<8x128xf32>
    %cst_31 = arith.constant 1.000000e+00 : f32
    %95 = vector.broadcast %cst_31 : f32 to vector<8x128xf32>
    %96 = arith.addf %95, %94 : vector<8x128xf32>
    %97 = arith.divf %95, %96 : vector<8x128xf32>
    %98 = math.tanh %92 : vector<8x128xf32>
    %99 = arith.select %4, %97, %98 : vector<8x128xi1>, vector<8x128xf32>
    %100 = vector.extract_strided_slice %99 {offsets = [0, 0], sizes = [8, 32], strides = [1, 1]} : vector<8x128xf32> to vector<8x32xf32>
    %101 = vector.extract_strided_slice %99 {offsets = [0, 32], sizes = [8, 32], strides = [1, 1]} : vector<8x128xf32> to vector<8x32xf32>
    %102 = vector.extract_strided_slice %99 {offsets = [0, 64], sizes = [8, 32], strides = [1, 1]} : vector<8x128xf32> to vector<8x32xf32>
    %103 = vector.extract_strided_slice %99 {offsets = [0, 96], sizes = [8, 32], strides = [1, 1]} : vector<8x128xf32> to vector<8x32xf32>
    %104 = arith.mulf %101, %79 : vector<8x32xf32>
    %105 = arith.mulf %100, %103 : vector<8x32xf32>
    %106 = arith.addf %104, %105 : vector<8x32xf32>
    %107 = math.tanh %106 : vector<8x32xf32>
    %108 = arith.mulf %102, %107 : vector<8x32xf32>
    %109 = arith.truncf %108 : vector<8x32xf32> to vector<8x32xbf16>
    %c0_32 = arith.constant 0 : index
    %110 = arith.index_cast %c3_i32 : i32 to index
    %c0_33 = arith.constant 0 : index
    %c0_34 = arith.constant 0 : index
    %111 = vector.load %arg3[%c0_32, %110, %c0_33, %c0_34] : memref<1x8x8x32xbf16, #tpu.memory_space<vmem>>, vector<1x1x8x32xbf16>
    %112 = vector.shape_cast %111 : vector<1x1x8x32xbf16> to vector<8x32xbf16>
    %113 = vector.shape_cast %109 : vector<8x32xbf16> to vector<1x1x8x32xbf16>
    tpu.vector_store %arg3[%c0_32, %110, %c0_33, %c0_34], %113 {strides = array<i32>} : memref<1x8x8x32xbf16, #tpu.memory_space<vmem>>, vector<1x1x8x32xbf16>,
    %114 = arith.truncf %108 : vector<8x32xf32> to vector<8x32xbf16>
    %c4_i32 = arith.constant 4 : i32
    %c0_35 = arith.constant 0 : index
    %115 = arith.index_cast %c4_i32 : i32 to index
    %c0_36 = arith.constant 0 : index
    %c0_37 = arith.constant 0 : index
    %116 = vector.load %arg1[%c0_35, %115, %c0_36, %c0_37] : memref<1x8x8x128xf32, #tpu.memory_space<vmem>>, vector<1x1x8x128xf32>
    %117 = vector.shape_cast %116 : vector<1x1x8x128xf32> to vector<8x128xf32>
    %cst_38 = arith.constant dense<0.000000e+00> : vector<8x128xf32>
    %118 = tpu.matmul %114, %1, %cst_38 {dimension_numbers = #tpu.dot_dimension_numbers<[1], [0], [0], [1], [0, 0, 1, 1], [], []>} : vector<8x32xbf16>, vector<32x128xbf16>, vector<8x128xf32> -> vector<8x128xf32>
    %119 = arith.addf %117, %118 : vector<8x128xf32>
    %120 = arith.negf %119 : vector<8x128xf32>
    %121 = math.exp %120 : vector<8x128xf32>
    %cst_39 = arith.constant 1.000000e+00 : f32
    %122 = vector.broadcast %cst_39 : f32 to vector<8x128xf32>
    %123 = arith.addf %122, %121 : vector<8x128xf32>
    %124 = arith.divf %122, %123 : vector<8x128xf32>
    %125 = math.tanh %119 : vector<8x128xf32>
    %126 = arith.select %4, %124, %125 : vector<8x128xi1>, vector<8x128xf32>
    %127 = vector.extract_strided_slice %126 {offsets = [0, 0], sizes = [8, 32], strides = [1, 1]} : vector<8x128xf32> to vector<8x32xf32>
    %128 = vector.extract_strided_slice %126 {offsets = [0, 32], sizes = [8, 32], strides = [1, 1]} : vector<8x128xf32> to vector<8x32xf32>
    %129 = vector.extract_strided_slice %126 {offsets = [0, 64], sizes = [8, 32], strides = [1, 1]} : vector<8x128xf32> to vector<8x32xf32>
    %130 = vector.extract_strided_slice %126 {offsets = [0, 96], sizes = [8, 32], strides = [1, 1]} : vector<8x128xf32> to vector<8x32xf32>
    %131 = arith.mulf %128, %106 : vector<8x32xf32>
    %132 = arith.mulf %127, %130 : vector<8x32xf32>
    %133 = arith.addf %131, %132 : vector<8x32xf32>
    %134 = math.tanh %133 : vector<8x32xf32>
    %135 = arith.mulf %129, %134 : vector<8x32xf32>
    %136 = arith.truncf %135 : vector<8x32xf32> to vector<8x32xbf16>
    %c0_40 = arith.constant 0 : index
    %137 = arith.index_cast %c4_i32 : i32 to index
    %c0_41 = arith.constant 0 : index
    %c0_42 = arith.constant 0 : index
    %138 = vector.load %arg3[%c0_40, %137, %c0_41, %c0_42] : memref<1x8x8x32xbf16, #tpu.memory_space<vmem>>, vector<1x1x8x32xbf16>
    %139 = vector.shape_cast %138 : vector<1x1x8x32xbf16> to vector<8x32xbf16>
    %140 = vector.shape_cast %136 : vector<8x32xbf16> to vector<1x1x8x32xbf16>
    tpu.vector_store %arg3[%c0_40, %137, %c0_41, %c0_42], %140 {strides = array<i32>} : memref<1x8x8x32xbf16, #tpu.memory_space<vmem>>, vector<1x1x8x32xbf16>,
    %141 = arith.truncf %135 : vector<8x32xf32> to vector<8x32xbf16>
    %c5_i32 = arith.constant 5 : i32
    %c0_43 = arith.constant 0 : index
    %142 = arith.index_cast %c5_i32 : i32 to index
    %c0_44 = arith.constant 0 : index
    %c0_45 = arith.constant 0 : index
    %143 = vector.load %arg1[%c0_43, %142, %c0_44, %c0_45] : memref<1x8x8x128xf32, #tpu.memory_space<vmem>>, vector<1x1x8x128xf32>
    %144 = vector.shape_cast %143 : vector<1x1x8x128xf32> to vector<8x128xf32>
    %cst_46 = arith.constant dense<0.000000e+00> : vector<8x128xf32>
    %145 = tpu.matmul %141, %1, %cst_46 {dimension_numbers = #tpu.dot_dimension_numbers<[1], [0], [0], [1], [0, 0, 1, 1], [], []>} : vector<8x32xbf16>, vector<32x128xbf16>, vector<8x128xf32> -> vector<8x128xf32>
    %146 = arith.addf %144, %145 : vector<8x128xf32>
    %147 = arith.negf %146 : vector<8x128xf32>
    %148 = math.exp %147 : vector<8x128xf32>
    %cst_47 = arith.constant 1.000000e+00 : f32
    %149 = vector.broadcast %cst_47 : f32 to vector<8x128xf32>
    %150 = arith.addf %149, %148 : vector<8x128xf32>
    %151 = arith.divf %149, %150 : vector<8x128xf32>
    %152 = math.tanh %146 : vector<8x128xf32>
    %153 = arith.select %4, %151, %152 : vector<8x128xi1>, vector<8x128xf32>
    %154 = vector.extract_strided_slice %153 {offsets = [0, 0], sizes = [8, 32], strides = [1, 1]} : vector<8x128xf32> to vector<8x32xf32>
    %155 = vector.extract_strided_slice %153 {offsets = [0, 32], sizes = [8, 32], strides = [1, 1]} : vector<8x128xf32> to vector<8x32xf32>
    %156 = vector.extract_strided_slice %153 {offsets = [0, 64], sizes = [8, 32], strides = [1, 1]} : vector<8x128xf32> to vector<8x32xf32>
    %157 = vector.extract_strided_slice %153 {offsets = [0, 96], sizes = [8, 32], strides = [1, 1]} : vector<8x128xf32> to vector<8x32xf32>
    %158 = arith.mulf %155, %133 : vector<8x32xf32>
    %159 = arith.mulf %154, %157 : vector<8x32xf32>
    %160 = arith.addf %158, %159 : vector<8x32xf32>
    %161 = math.tanh %160 : vector<8x32xf32>
    %162 = arith.mulf %156, %161 : vector<8x32xf32>
    %163 = arith.truncf %162 : vector<8x32xf32> to vector<8x32xbf16>
    %c0_48 = arith.constant 0 : index
    %164 = arith.index_cast %c5_i32 : i32 to index
    %c0_49 = arith.constant 0 : index
    %c0_50 = arith.constant 0 : index
    %165 = vector.load %arg3[%c0_48, %164, %c0_49, %c0_50] : memref<1x8x8x32xbf16, #tpu.memory_space<vmem>>, vector<1x1x8x32xbf16>
    %166 = vector.shape_cast %165 : vector<1x1x8x32xbf16> to vector<8x32xbf16>
    %167 = vector.shape_cast %163 : vector<8x32xbf16> to vector<1x1x8x32xbf16>
    tpu.vector_store %arg3[%c0_48, %164, %c0_49, %c0_50], %167 {strides = array<i32>} : memref<1x8x8x32xbf16, #tpu.memory_space<vmem>>, vector<1x1x8x32xbf16>,
    %168 = arith.truncf %162 : vector<8x32xf32> to vector<8x32xbf16>
    %c6_i32 = arith.constant 6 : i32
    %c0_51 = arith.constant 0 : index
    %169 = arith.index_cast %c6_i32 : i32 to index
    %c0_52 = arith.constant 0 : index
    %c0_53 = arith.constant 0 : index
    %170 = vector.load %arg1[%c0_51, %169, %c0_52, %c0_53] : memref<1x8x8x128xf32, #tpu.memory_space<vmem>>, vector<1x1x8x128xf32>
    %171 = vector.shape_cast %170 : vector<1x1x8x128xf32> to vector<8x128xf32>
    %cst_54 = arith.constant dense<0.000000e+00> : vector<8x128xf32>
    %172 = tpu.matmul %168, %1, %cst_54 {dimension_numbers = #tpu.dot_dimension_numbers<[1], [0], [0], [1], [0, 0, 1, 1], [], []>} : vector<8x32xbf16>, vector<32x128xbf16>, vector<8x128xf32> -> vector<8x128xf32>
    %173 = arith.addf %171, %172 : vector<8x128xf32>
    %174 = arith.negf %173 : vector<8x128xf32>
    %175 = math.exp %174 : vector<8x128xf32>
    %cst_55 = arith.constant 1.000000e+00 : f32
    %176 = vector.broadcast %cst_55 : f32 to vector<8x128xf32>
    %177 = arith.addf %176, %175 : vector<8x128xf32>
    %178 = arith.divf %176, %177 : vector<8x128xf32>
    %179 = math.tanh %173 : vector<8x128xf32>
    %180 = arith.select %4, %178, %179 : vector<8x128xi1>, vector<8x128xf32>
    %181 = vector.extract_strided_slice %180 {offsets = [0, 0], sizes = [8, 32], strides = [1, 1]} : vector<8x128xf32> to vector<8x32xf32>
    %182 = vector.extract_strided_slice %180 {offsets = [0, 32], sizes = [8, 32], strides = [1, 1]} : vector<8x128xf32> to vector<8x32xf32>
    %183 = vector.extract_strided_slice %180 {offsets = [0, 64], sizes = [8, 32], strides = [1, 1]} : vector<8x128xf32> to vector<8x32xf32>
    %184 = vector.extract_strided_slice %180 {offsets = [0, 96], sizes = [8, 32], strides = [1, 1]} : vector<8x128xf32> to vector<8x32xf32>
    %185 = arith.mulf %182, %160 : vector<8x32xf32>
    %186 = arith.mulf %181, %184 : vector<8x32xf32>
    %187 = arith.addf %185, %186 : vector<8x32xf32>
    %188 = math.tanh %187 : vector<8x32xf32>
    %189 = arith.mulf %183, %188 : vector<8x32xf32>
    %190 = arith.truncf %189 : vector<8x32xf32> to vector<8x32xbf16>
    %c0_56 = arith.constant 0 : index
    %191 = arith.index_cast %c6_i32 : i32 to index
    %c0_57 = arith.constant 0 : index
    %c0_58 = arith.constant 0 : index
    %192 = vector.load %arg3[%c0_56, %191, %c0_57, %c0_58] : memref<1x8x8x32xbf16, #tpu.memory_space<vmem>>, vector<1x1x8x32xbf16>
    %193 = vector.shape_cast %192 : vector<1x1x8x32xbf16> to vector<8x32xbf16>
    %194 = vector.shape_cast %190 : vector<8x32xbf16> to vector<1x1x8x32xbf16>
    tpu.vector_store %arg3[%c0_56, %191, %c0_57, %c0_58], %194 {strides = array<i32>} : memref<1x8x8x32xbf16, #tpu.memory_space<vmem>>, vector<1x1x8x32xbf16>,
    %195 = arith.truncf %189 : vector<8x32xf32> to vector<8x32xbf16>
    %c7_i32 = arith.constant 7 : i32
    %c0_59 = arith.constant 0 : index
    %196 = arith.index_cast %c7_i32 : i32 to index
    %c0_60 = arith.constant 0 : index
    %c0_61 = arith.constant 0 : index
    %197 = vector.load %arg1[%c0_59, %196, %c0_60, %c0_61] : memref<1x8x8x128xf32, #tpu.memory_space<vmem>>, vector<1x1x8x128xf32>
    %198 = vector.shape_cast %197 : vector<1x1x8x128xf32> to vector<8x128xf32>
    %cst_62 = arith.constant dense<0.000000e+00> : vector<8x128xf32>
    %199 = tpu.matmul %195, %1, %cst_62 {dimension_numbers = #tpu.dot_dimension_numbers<[1], [0], [0], [1], [0, 0, 1, 1], [], []>} : vector<8x32xbf16>, vector<32x128xbf16>, vector<8x128xf32> -> vector<8x128xf32>
    %200 = arith.addf %198, %199 : vector<8x128xf32>
    %201 = arith.negf %200 : vector<8x128xf32>
    %202 = math.exp %201 : vector<8x128xf32>
    %cst_63 = arith.constant 1.000000e+00 : f32
    %203 = vector.broadcast %cst_63 : f32 to vector<8x128xf32>
    %204 = arith.addf %203, %202 : vector<8x128xf32>
    %205 = arith.divf %203, %204 : vector<8x128xf32>
    %206 = math.tanh %200 : vector<8x128xf32>
    %207 = arith.select %4, %205, %206 : vector<8x128xi1>, vector<8x128xf32>
    %208 = vector.extract_strided_slice %207 {offsets = [0, 0], sizes = [8, 32], strides = [1, 1]} : vector<8x128xf32> to vector<8x32xf32>
    %209 = vector.extract_strided_slice %207 {offsets = [0, 32], sizes = [8, 32], strides = [1, 1]} : vector<8x128xf32> to vector<8x32xf32>
    %210 = vector.extract_strided_slice %207 {offsets = [0, 64], sizes = [8, 32], strides = [1, 1]} : vector<8x128xf32> to vector<8x32xf32>
    %211 = vector.extract_strided_slice %207 {offsets = [0, 96], sizes = [8, 32], strides = [1, 1]} : vector<8x128xf32> to vector<8x32xf32>
    %212 = arith.mulf %209, %187 : vector<8x32xf32>
    %213 = arith.mulf %208, %211 : vector<8x32xf32>
    %214 = arith.addf %212, %213 : vector<8x32xf32>
    %215 = math.tanh %214 : vector<8x32xf32>
    %216 = arith.mulf %210, %215 : vector<8x32xf32>
    %217 = arith.truncf %216 : vector<8x32xf32> to vector<8x32xbf16>
    %c0_64 = arith.constant 0 : index
    %218 = arith.index_cast %c7_i32 : i32 to index
    %c0_65 = arith.constant 0 : index
    %c0_66 = arith.constant 0 : index
    %219 = vector.load %arg3[%c0_64, %218, %c0_65, %c0_66] : memref<1x8x8x32xbf16, #tpu.memory_space<vmem>>, vector<1x1x8x32xbf16>
    %220 = vector.shape_cast %219 : vector<1x1x8x32xbf16> to vector<8x32xbf16>
    %221 = vector.shape_cast %217 : vector<8x32xbf16> to vector<1x1x8x32xbf16>
    tpu.vector_store %arg3[%c0_64, %218, %c0_65, %c0_66], %221 {strides = array<i32>} : memref<1x8x8x32xbf16, #tpu.memory_space<vmem>>, vector<1x1x8x32xbf16>,
    %222 = arith.truncf %216 : vector<8x32xf32> to vector<8x32xbf16>
    %c8_i32 = arith.constant 8 : i32
    return
  }
  func.func @transform_0(%arg0: i32) -> (i32, i32, i32, i32) {
    %c0_i32 = arith.constant 0 : i32
    %c0_i32_0 = arith.constant 0 : i32
    %c0_i32_1 = arith.constant 0 : i32
    %c0_i32_2 = arith.constant 0 : i32
    return %arg0, %c0_i32, %c0_i32_0, %c0_i32_1 : i32, i32, i32, i32
  }
  func.func @transform_1(%arg0: i32) -> (i32, i32, i32) {
    %c0_i32 = arith.constant 0 : i32
    %c0_i32_0 = arith.constant 0 : i32
    %c0_i32_1 = arith.constant 0 : i32
    return %arg0, %c0_i32, %c0_i32_0 : i32, i32, i32
  }
  func.func @transform_2(%arg0: i32) -> (i32, i32, i32, i32) {
    %c0_i32 = arith.constant 0 : i32
    %c0_i32_0 = arith.constant 0 : i32
    %c0_i32_1 = arith.constant 0 : i32
    %c0_i32_2 = arith.constant 0 : i32
    return %arg0, %c0_i32, %c0_i32_0, %c0_i32_1 : i32, i32, i32, i32
  }
}

</mosaic_0001>

<llo_original>
// kernel: mask_lstm.1
$region0: #{mask_lstm.1}
  #allocation0 [shape = 'u32[]', space=smem, size = 0x4, offset = 0x4, fixed_abs, tag = 'smem constant byte address 0x4 - core index']
  #allocation1 [shape = 'u32[144,128]{1,0:T(1,128)}', space=vmem, size = 0x12000, scoped, tag = 'internal scratch']
  %s0 = inlined_call_operand.hbm [shape: f32[2,8,8,128], index: 0, kind: input, shape index: {}]
  %s1 = inlined_call_operand.hbm [shape: bf16[2,32,128], index: 1, kind: input, shape index: {}]
  %s2 = inlined_call_operand.hbm [shape: bf16[2,8,8,32], index: 2, kind: output, shape index: {}]
  %s3 = sld [smem:[#allocation0]]
  $region49: #{mask_lstm.1} parent=0
    _
  %s5 = ssub.s32 1, %s3
  %s6 = scalar_select 0, %s5, %s3
  $region1: #{mask_lstm.1} parent=0
    #allocation2 [shape = 'u8[65536]{0}', space=vmem, size = 0x10000, scoped, tag = 'input window, operand 0']
    #allocation3 [shape = 's32[2]{0}', space=sflag, size = 0x8, scoped, tag = 'scoped memory for mask_lstm.1']
    #allocation4 [shape = 's32[2]{0}', space=sflag, size = 0x8, scoped, tag = 'scoped memory for mask_lstm.1']
    #allocation5 [shape = 'u8[16384]{0}', space=vmem, size = 0x4000, scoped, tag = 'input window, operand 1']
    #allocation6 [shape = 's32[2]{0}', space=sflag, size = 0x8, scoped, tag = 'scoped memory for mask_lstm.1']
    #allocation7 [shape = 'u8[32768]{0}', space=vmem, size = 0x8000, scoped, tag = 'output window, operand 0']
    %7 = vsyncpa [#allocation3], 0
    %s8 = scalar_lea.sflag [#allocation3], 1
    %9 = vsyncpa %s8, 0
    %10 = vsyncpa [#allocation6], 0
    %s11 = scalar_lea.sflag [#allocation6], 1
    %12 = vsyncpa %s11, 0
    %13 = vsyncpa [#allocation4], 0
    %s14 = scalar_lea.sflag [#allocation4], 1
    %15 = vsyncpa %s14, 0
    loop: start=0, step=1, limit=4
    $region2: #{mask_lstm.1} parent=1 // loop_pre_header
      _
    $region3: #{mask_lstm.1} parent=1 // loop_header
      %s17 = sphi 0, %s21
      %p18 = scmp.ge.s32.totalorder %s17, 4
      %s27 = sphi 0, %s29
      %s30 = sphi 0, %s27
      %s31 = sphi 0, %s30
      %s47 = sphi 0, %s31
      %s53 = sphi 0, %s55
      %s56 = sphi 0, %s53
      %s57 = sphi 0, %s56
      %s73 = sphi 0, %s57
      %s79 = sphi 0, %s81
      %s82 = sphi 0, %s79
      %s83 = sphi 0, %s82
      %s99 = sphi 0, %s83
    $region4: #{mask_lstm.1} parent=1 // loop_header_branch
      %20 = sbr.rel (%p18) target = $region8
    $region5: #{mask_lstm.1} parent=1 // loop_body
      %s22 = ssub.s32 %s17, 1
      %s23 = ssub.s32 %s17, 2
      %s24 = sadd.s32 %s17, 1
      %s25 = ssub.s32 %s17, %s24
      %p26 = scmp.eq.s32.totalorder %s25, 0
      %s28 = sadd.s32 %s27, 1
      %s29 = scalar_select %p26, %s27, %s28
      %p32 = pneg %p26
      %p33 = scmp.eq.s32.totalorder %s17, 1
      %p34 = por %p32, %p33
      %p35 = scmp.ne.s32.totalorder %s27, %s30
      %p36 = scmp.eq.s32.totalorder %s17, 0
      %p37 = por %p35, %p36
      %p38 = scmp.ne.s32.totalorder %s27, %s30
      %p39 = scmp.eq.s32.totalorder %s22, 1
      %p40 = por %p38, %p39
      %p41 = scmp.ne.s32.totalorder %s30, %s31
      %p42 = scmp.eq.s32.totalorder %s22, 0
      %p43 = por %p41, %p42
      %p44 = scmp.ne.s32.totalorder %s30, %s31
      %p45 = scmp.eq.s32.totalorder %s23, 1
      %p46 = por %p44, %p45
      %p48 = scmp.ne.s32.totalorder %s31, %s47
      %p49 = scmp.eq.s32.totalorder %s23, 0
      %p50 = por %p48, %p49
      %s51 = ssub.s32 %s17, %s24
      %p52 = scmp.eq.s32.totalorder %s51, 0
      %s54 = sadd.s32 %s53, 1
      %s55 = scalar_select %p52, %s53, %s54
      %p58 = pneg %p52
      %p59 = scmp.eq.s32.totalorder %s17, 1
      %p60 = por %p58, %p59
      %p61 = scmp.ne.s32.totalorder %s53, %s56
      %p62 = scmp.eq.s32.totalorder %s17, 0
      %p63 = por %p61, %p62
      %p64 = scmp.ne.s32.totalorder %s53, %s56
      %p65 = scmp.eq.s32.totalorder %s22, 1
      %p66 = por %p64, %p65
      %p67 = scmp.ne.s32.totalorder %s56, %s57
      %p68 = scmp.eq.s32.totalorder %s22, 0
      %p69 = por %p67, %p68
      %p70 = scmp.ne.s32.totalorder %s56, %s57
      %p71 = scmp.eq.s32.totalorder %s23, 1
      %p72 = por %p70, %p71
      %p74 = scmp.ne.s32.totalorder %s57, %s73
      %p75 = scmp.eq.s32.totalorder %s23, 0
      %p76 = por %p74, %p75
      %s77 = ssub.s32 %s17, %s24
      %p78 = scmp.eq.s32.totalorder %s77, 0
      %s80 = sadd.s32 %s79, 1
      %s81 = scalar_select %p78, %s79, %s80
      %p84 = pneg %p78
      %p85 = scmp.eq.s32.totalorder %s17, 1
      %p86 = por %p84, %p85
      %p87 = scmp.ne.s32.totalorder %s79, %s82
      %p88 = scmp.eq.s32.totalorder %s17, 0
      %p89 = por %p87, %p88
      %p90 = scmp.ne.s32.totalorder %s79, %s82
      %p91 = scmp.eq.s32.totalorder %s22, 1
      %p92 = por %p90, %p91
      %p93 = scmp.ne.s32.totalorder %s82, %s83
      %p94 = scmp.eq.s32.totalorder %s22, 0
      %p95 = por %p93, %p94
      %p96 = scmp.ne.s32.totalorder %s82, %s83
      %p97 = scmp.eq.s32.totalorder %s23, 1
      %p98 = por %p96, %p97
      %p100 = scmp.ne.s32.totalorder %s83, %s99
      %p101 = scmp.eq.s32.totalorder %s23, 0
      %p102 = por %p100, %p101
      %p103 = scmp.le.s32.totalorder 1, %s17
      %p104 = scmp.lt.s32.totalorder %s17, 3
      %p105 = pnand %p103, %p104
      %p106 = pneg %p105
      // Predicated region
      $region9: #{mask_lstm.1} parent=5 // pred_check
        _
      $region10: #{mask_lstm.1} parent=5 // pred_check_branch
        %108 = sbr.rel (%p105) target = $region12
      $region11: #{mask_lstm.1} parent=5 // pred_region
        %s109 = ssub.s32 %s17, 1
      $region12: #{mask_lstm.1} parent=5 // pred_fallthru
        _
      %p110 = scmp.lt.s32.totalorder %s17, 2
      // Predicated region
      $region13: #{mask_lstm.1} parent=5 // pred_check
        %p111 = pneg %p110
      $region14: #{mask_lstm.1} parent=5 // pred_check_branch
        %113 = sbr.rel (%p111) target = $region16
      $region15: #{mask_lstm.1} parent=5 // pred_region
        // Predicated region
        $region17: #{mask_lstm.1} parent=15 // pred_check
          %p114 = pneg %p37
        $region18: #{mask_lstm.1} parent=15 // pred_check_branch
          %116 = sbr.rel (%p114) target = $region20
        $region19: #{mask_lstm.1} parent=15 // pred_region
          %s117 = sand.u32 %s27, 1
          %s118 = scalar_lea.sflag [#allocation3], %s117
          %s119 = sand.u32 %s27, 1
          %s120 = smul.addr %s119, 64
          %s121 = scalar_lea.vmem [#allocation2], %s120
          %s123 = ssub.s32 1024, 1024
          %124 = vsyncadd %s118, %s123
          %s125 = smul.addr %s17, 8
          %s126 = smul.addr %s125, 128
          %s127 = scalar_lea.hbm %s0, %s126
          %s128 = sshll.u32 %s121, 4
          %s129 = int_to_ptr.vmem [resolvable:$true] %s128
          %134 = dma.hbm_to_vmem [thread:$0]  %s127, 1024, %s129, %s118, 128, 128, 8
        $region20: #{mask_lstm.1} parent=15 // pred_fallthru
          _
        // Predicated region
        $region21: #{mask_lstm.1} parent=15 // pred_check
          %p135 = pneg %p63
        $region22: #{mask_lstm.1} parent=15 // pred_check_branch
          %137 = sbr.rel (%p135) target = $region24
        $region23: #{mask_lstm.1} parent=15 // pred_region
          %s138 = sand.u32 %s53, 1
          %s139 = scalar_lea.sflag [#allocation6], %s138
          %s140 = sand.u32 %s53, 1
          %s141 = smul.addr %s140, 16
          %s142 = scalar_lea.vmem [#allocation5], %s141
          %s144 = ssub.s32 256, 256
          %145 = vsyncadd %s139, %s144
          %s146 = smul.addr %s17, 4
          %s147 = smul.addr %s146, 64
          %s148 = scalar_lea.hbm %s1, %s147
          %s149 = sshll.u32 %s142, 4
          %s150 = int_to_ptr.vmem [resolvable:$true] %s149
          %155 = dma.hbm_to_vmem [thread:$0]  %s148, 256, %s150, %s139, 64, 64, 4
        $region24: #{mask_lstm.1} parent=15 // pred_fallthru
          _
      $region16: #{mask_lstm.1} parent=5 // pred_fallthru
        _
      %p156 = scmp.le.s32.totalorder 1, %s17
      %p157 = scmp.lt.s32.totalorder %s17, 3
      %p158 = pnand %p156, %p157
      %p159 = pneg %p158
      // Predicated region
      $region25: #{mask_lstm.1} parent=5 // pred_check
        _
      $region26: #{mask_lstm.1} parent=5 // pred_check_branch
        %161 = sbr.rel (%p158) target = $region28
      $region27: #{mask_lstm.1} parent=5 // pred_region
        %s162 = ssub.s32 %s17, 1
        %s163 = sand.u32 %s30, 1
        %s164 = scalar_lea.sflag [#allocation3], %s163
        %s165 = sand.u32 %s30, 1
        %s166 = smul.addr %s165, 64
        %s167 = scalar_lea.vmem [#allocation2], %s166
        // Predicated region
        $region29: #{mask_lstm.1} parent=27 // pred_check
          %p168 = pneg %p43
        $region30: #{mask_lstm.1} parent=27 // pred_check_branch
          %170 = sbr.rel (%p168) target = $region32
        $region31: #{mask_lstm.1} parent=27 // pred_region
          %171 = dma.done %s164, 1024
        $region32: #{mask_lstm.1} parent=27 // pred_fallthru
          _
        %s172 = sand.u32 %s56, 1
        %s173 = scalar_lea.sflag [#allocation6], %s172
        %s174 = sand.u32 %s56, 1
        %s175 = smul.addr %s174, 16
        %s176 = scalar_lea.vmem [#allocation5], %s175
        // Predicated region
        $region33: #{mask_lstm.1} parent=27 // pred_check
          %p177 = pneg %p69
        $region34: #{mask_lstm.1} parent=27 // pred_check_branch
          %179 = sbr.rel (%p177) target = $region36
        $region35: #{mask_lstm.1} parent=27 // pred_region
          %180 = dma.done %s173, 256
        $region36: #{mask_lstm.1} parent=27 // pred_fallthru
          _
        %s181 = sand.u32 %s30, 1
        %s182 = scalar_lea.sflag [#allocation3], %s181
        %s183 = sand.u32 %s30, 1
        %s184 = smul.addr %s183, 64
        %s185 = scalar_lea.vmem [#allocation2], %s184
        %p186 = pneg %p43
        %p187 = pneg %p40
        %s188 = sand.u32 %s56, 1
        %s189 = scalar_lea.sflag [#allocation6], %s188
        %s190 = sand.u32 %s56, 1
        %s191 = smul.addr %s190, 16
        %s192 = scalar_lea.vmem [#allocation5], %s191
        %p193 = pneg %p69
        %p194 = pneg %p66
        %p195 = pneg %p95
        %p196 = pneg %p92
        %s197 = sand.u32 %s82, 1
        %s198 = scalar_lea.sflag [#allocation4], %s197
        %s199 = sand.u32 %s82, 1
        %s200 = smul.addr %s199, 32
        %s201 = scalar_lea.vmem [#allocation7], %s200
        %v203 = vld [vmem:[%s176] sm:$0xf]
        %v204 = vld [vmem:[%s176 + $0x4] sm:$0xf]
        %v205 = vld [vmem:[%s176 + $0x8] sm:$0xf]
        %v206 = vld [vmem:[%s176 + $0xc] sm:$0xf]
        %v207 = vlaneseq
        %v208 = vand.u32 %v207, 127
        %vm209 = vcmp.lt.s32.totalorder %v208, 96
        %v210 = vld [vmem:[%s167] sm:$0xff]
        %v215 = vunpack.c.l.b16 %v203
        %v216 = vunpack.c.l.b16 %v204
        %v217 = vunpack.c.l.b16 %v205
        %v218 = vunpack.c.l.b16 %v206
        %v219 = vpack.c.b16 %v216, %v215
        %v220 = vpack.c.b16 %v218, %v217
        %vm223 = vcmask 261120
        %v225 = vsel %vm223, 0, 0
        %227 = vmatprep.subr.bf16.mxu0 0
        %228 = vmatpush1.bf16.msra.mxu0 %v219
        %229 = vmatprep.subr.bf16.mxu0 0
        %230 = vmatpush1.bf16.msra.mxu0 %v220
        %231 = vmatprep.subr.bf16.mxu0 0
        %232 = vmatpush1.bf16.msra.mxu0 0
        %233 = vmatprep.subr.bf16.mxu0 0
        %234 = vmatpush1.bf16.msra.mxu0 0
        %235 = vmatprep.subr.bf16.mxu0 0
        %236 = vmatpush1.bf16.msra.mxu0 0
        %237 = vmatprep.subr.bf16.mxu0 0
        %238 = vmatpush1.bf16.msra.mxu0 0
        %239 = vmatprep.subr.bf16.mxu0 0
        %240 = vmatpush1.bf16.msra.mxu0 0
        %241 = vmatprep.subr.bf16.mxu0 0
        %242 = vmatpush1.bf16.msra.mxu0 0
        %243 = vmatprep.subr.bf16.mxu0 0
        %244 = vmatpush1.bf16.msra.mxu0 0
        %245 = vmatprep.subr.bf16.mxu0 0
        %246 = vmatpush1.bf16.msra.mxu0 0
        %247 = vmatprep.subr.bf16.mxu0 0
        %248 = vmatpush1.bf16.msra.mxu0 0
        %249 = vmatprep.subr.bf16.mxu0 0
        %250 = vmatpush1.bf16.msra.mxu0 0
        %251 = vmatprep.subr.bf16.mxu0 0
        %252 = vmatpush1.bf16.msra.mxu0 0
        %253 = vmatprep.subr.bf16.mxu0 0
        %254 = vmatpush1.bf16.msra.mxu0 0
        %255 = vmatprep.subr.bf16.mxu0 0
        %256 = vmatpush1.bf16.msra.mxu0 0
        %257 = vmatprep.subr.bf16.mxu0 0
        %258 = vmatpush1.bf16.msra.mxu0 0
        %259 = vmatprep.mubr.bf16.mxu0 0
        %260 = vmatmul.mubr.bf16.gmra.mrb[0].mxu0 %v225
        %v261 = vpop.f32.mrb[0].mxu0
        %v262 = vadd.f32 0.0, %v261
        %v263 = vpop.f32.mrb[0].mxu0
        %v264 = vpop.f32.mrb[0].mxu0
        %v265 = vpop.f32.mrb[0].mxu0
        %266 = vdwg.mxu0
        %v267 = vadd.f32 %v210, %v262
        %v268 = vxor.u32 %v267, 2147483648
        %v269 = vmul.f32 %v268, 1.442695
        %v270 = vpow.pop %v269
        %v271 = vadd.f32 %v270, 1.0
        %v272 = vrcp.pop %v271
        %v273 = vmul.f32 1.0, %v272
        %v274 = vtanh.pop %v267
        %v275 = vsel %vm209, %v273, %v274
        %v276 = vmul.f32 %v275, 0.0
        %278 = vrot.lane.b32.xlu0 %v275, 32
        %v279 = vpop.permute.xlu0 %278
        %v281 = vmul.f32 %v275, %v279
        %283 = vrot.lane.b32.xlu0 %v281, 32
        %v284 = vpop.permute.xlu0 %283
        %v286 = vadd.f32 %v276, %v284
        %v287 = vtanh.pop %v286
        %289 = vrot.lane.b32.xlu0 %v287, 32
        %v290 = vpop.permute.xlu0 %289
        %v292 = vmul.f32 %v275, %v290
        %v293 = vpack.c.bf16 %v292, %v292
        %v295 = vunpack.c.l.b16 %v293
        %v296 = vpack.c.b16 %v295, %v295
        %297 = vrot.lane.b32.xlu0 %v296, 64
        %v298 = vpop.permute.xlu0 %297
        %vm300 = vcmask 257024
        %301 = vst.msk [vmem:[%s201] sm:$0xf] %vm300, %v298
        %s302 = scalar_lea.vmem %s167, 8 [#allocation2]
        %v303 = vld [vmem:[%s302] sm:$0xff]
        %304 = vrot.lane.b32.xlu0 %v293, 64
        %v305 = vpop.permute.xlu0 %304
        %v307 = vsel %vm223, %v305, 0
        %309 = vmatprep.subr.bf16.mxu0 0
        %310 = vmatpush1.bf16.msra.mxu0 %v219
        %311 = vmatprep.subr.bf16.mxu0 0
        %312 = vmatpush1.bf16.msra.mxu0 %v220
        %313 = vmatprep.subr.bf16.mxu0 0
        %314 = vmatpush1.bf16.msra.mxu0 0
        %315 = vmatprep.subr.bf16.mxu0 0
        %316 = vmatpush1.bf16.msra.mxu0 0
        %317 = vmatprep.subr.bf16.mxu0 0
        %318 = vmatpush1.bf16.msra.mxu0 0
        %319 = vmatprep.subr.bf16.mxu0 0
        %320 = vmatpush1.bf16.msra.mxu0 0
        %321 = vmatprep.subr.bf16.mxu0 0
        %322 = vmatpush1.bf16.msra.mxu0 0
        %323 = vmatprep.subr.bf16.mxu0 0
        %324 = vmatpush1.bf16.msra.mxu0 0
        %325 = vmatprep.subr.bf16.mxu0 0
        %326 = vmatpush1.bf16.msra.mxu0 0
        %327 = vmatprep.subr.bf16.mxu0 0
        %328 = vmatpush1.bf16.msra.mxu0 0
        %329 = vmatprep.subr.bf16.mxu0 0
        %330 = vmatpush1.bf16.msra.mxu0 0
        %331 = vmatprep.subr.bf16.mxu0 0
        %332 = vmatpush1.bf16.msra.mxu0 0
        %333 = vmatprep.subr.bf16.mxu0 0
        %334 = vmatpush1.bf16.msra.mxu0 0
        %335 = vmatprep.subr.bf16.mxu0 0
        %336 = vmatpush1.bf16.msra.mxu0 0
        %337 = vmatprep.subr.bf16.mxu0 0
        %338 = vmatpush1.bf16.msra.mxu0 0
        %339 = vmatprep.subr.bf16.mxu0 0
        %340 = vmatpush1.bf16.msra.mxu0 0
        %341 = vmatprep.mubr.bf16.mxu0 0
        %342 = vmatmul.mubr.bf16.gmra.mrb[0].mxu0 %v307
        %v343 = vpop.f32.mrb[0].mxu0
        %v344 = vadd.f32 0.0, %v343
        %v345 = vpop.f32.mrb[0].mxu0
        %v346 = vpop.f32.mrb[0].mxu0
        %v347 = vpop.f32.mrb[0].mxu0
        %348 = vdwg.mxu0
        %v349 = vadd.f32 %v303, %v344
        %v350 = vxor.u32 %v349, 2147483648
        %v351 = vmul.f32 %v350, 1.442695
        %v352 = vpow.pop %v351
        %v353 = vadd.f32 %v352, 1.0
        %v354 = vrcp.pop %v353
        %v355 = vmul.f32 1.0, %v354
        %v356 = vtanh.pop %v349
        %v357 = vsel %vm209, %v355, %v356
        %v358 = vmul.f32 %v357, %v286
        %360 = vrot.lane.b32.xlu0 %v357, 32
        %v361 = vpop.permute.xlu0 %360
        %v363 = vmul.f32 %v357, %v361
        %365 = vrot.lane.b32.xlu0 %v363, 32
        %v366 = vpop.permute.xlu0 %365
        %v368 = vadd.f32 %v358, %v366
        %v369 = vtanh.pop %v368
        %371 = vrot.lane.b32.xlu0 %v369, 32
        %v372 = vpop.permute.xlu0 %371
        %v374 = vmul.f32 %v357, %v372
        %v375 = vpack.c.bf16 %v374, %v374
        %v377 = vunpack.c.l.b16 %v375
        %v378 = vpack.c.b16 %v377, %v377
        %379 = vrot.lane.b32.xlu0 %v378, 64
        %v380 = vpop.permute.xlu0 %379
        %s382 = scalar_lea.vmem %s201, 4 [#allocation7]
        %383 = vst.msk [vmem:[%s382] sm:$0xf] %vm300, %v380
        %s384 = scalar_lea.vmem %s167, 16 [#allocation2]
        %v385 = vld [vmem:[%s384] sm:$0xff]
        %386 = vrot.lane.b32.xlu0 %v375, 64
        %v387 = vpop.permute.xlu0 %386
        %v389 = vsel %vm223, %v387, 0
        %391 = vmatprep.subr.bf16.mxu0 0
        %392 = vmatpush1.bf16.msra.mxu0 %v219
        %393 = vmatprep.subr.bf16.mxu0 0
        %394 = vmatpush1.bf16.msra.mxu0 %v220
        %395 = vmatprep.subr.bf16.mxu0 0
        %396 = vmatpush1.bf16.msra.mxu0 0
        %397 = vmatprep.subr.bf16.mxu0 0
        %398 = vmatpush1.bf16.msra.mxu0 0
        %399 = vmatprep.subr.bf16.mxu0 0
        %400 = vmatpush1.bf16.msra.mxu0 0
        %401 = vmatprep.subr.bf16.mxu0 0
        %402 = vmatpush1.bf16.msra.mxu0 0
        %403 = vmatprep.subr.bf16.mxu0 0
        %404 = vmatpush1.bf16.msra.mxu0 0
        %405 = vmatprep.subr.bf16.mxu0 0
        %406 = vmatpush1.bf16.msra.mxu0 0
        %407 = vmatprep.subr.bf16.mxu0 0
        %408 = vmatpush1.bf16.msra.mxu0 0
        %409 = vmatprep.subr.bf16.mxu0 0
        %410 = vmatpush1.bf16.msra.mxu0 0
        %411 = vmatprep.subr.bf16.mxu0 0
        %412 = vmatpush1.bf16.msra.mxu0 0
        %413 = vmatprep.subr.bf16.mxu0 0
        %414 = vmatpush1.bf16.msra.mxu0 0
        %415 = vmatprep.subr.bf16.mxu0 0
        %416 = vmatpush1.bf16.msra.mxu0 0
        %417 = vmatprep.subr.bf16.mxu0 0
        %418 = vmatpush1.bf16.msra.mxu0 0
        %419 = vmatprep.subr.bf16.mxu0 0
        %420 = vmatpush1.bf16.msra.mxu0 0
        %421 = vmatprep.subr.bf16.mxu0 0
        %422 = vmatpush1.bf16.msra.mxu0 0
        %423 = vmatprep.mubr.bf16.mxu0 0
        %424 = vmatmul.mubr.bf16.gmra.mrb[0].mxu0 %v389
        %v425 = vpop.f32.mrb[0].mxu0
        %v426 = vadd.f32 0.0, %v425
        %v427 = vpop.f32.mrb[0].mxu0
        %v428 = vpop.f32.mrb[0].mxu0
        %v429 = vpop.f32.mrb[0].mxu0
        %430 = vdwg.mxu0
        %v431 = vadd.f32 %v385, %v426
        %v432 = vxor.u32 %v431, 2147483648
        %v433 = vmul.f32 %v432, 1.442695
        %v434 = vpow.pop %v433
        %v435 = vadd.f32 %v434, 1.0
        %v436 = vrcp.pop %v435
        %v437 = vmul.f32 1.0, %v436
        %v438 = vtanh.pop %v431
        %v439 = vsel %vm209, %v437, %v438
        %v440 = vmul.f32 %v439, %v368
        %442 = vrot.lane.b32.xlu0 %v439, 32
        %v443 = vpop.permute.xlu0 %442
        %v445 = vmul.f32 %v439, %v443
        %447 = vrot.lane.b32.xlu0 %v445, 32
        %v448 = vpop.permute.xlu0 %447
        %v450 = vadd.f32 %v440, %v448
        %v451 = vtanh.pop %v450
        %453 = vrot.lane.b32.xlu0 %v451, 32
        %v454 = vpop.permute.xlu0 %453
        %v456 = vmul.f32 %v439, %v454
        %v457 = vpack.c.bf16 %v456, %v456
        %v459 = vunpack.c.l.b16 %v457
        %v460 = vpack.c.b16 %v459, %v459
        %461 = vrot.lane.b32.xlu0 %v460, 64
        %v462 = vpop.permute.xlu0 %461
        %s464 = scalar_lea.vmem %s201, 8 [#allocation7]
        %465 = vst.msk [vmem:[%s464] sm:$0xf] %vm300, %v462
        %s466 = scalar_lea.vmem %s167, 24 [#allocation2]
        %v467 = vld [vmem:[%s466] sm:$0xff]
        %468 = vrot.lane.b32.xlu0 %v457, 64
        %v469 = vpop.permute.xlu0 %468
        %v471 = vsel %vm223, %v469, 0
        %473 = vmatprep.subr.bf16.mxu0 0
        %474 = vmatpush1.bf16.msra.mxu0 %v219
        %475 = vmatprep.subr.bf16.mxu0 0
        %476 = vmatpush1.bf16.msra.mxu0 %v220
        %477 = vmatprep.subr.bf16.mxu0 0
        %478 = vmatpush1.bf16.msra.mxu0 0
        %479 = vmatprep.subr.bf16.mxu0 0
        %480 = vmatpush1.bf16.msra.mxu0 0
        %481 = vmatprep.subr.bf16.mxu0 0
        %482 = vmatpush1.bf16.msra.mxu0 0
        %483 = vmatprep.subr.bf16.mxu0 0
        %484 = vmatpush1.bf16.msra.mxu0 0
        %485 = vmatprep.subr.bf16.mxu0 0
        %486 = vmatpush1.bf16.msra.mxu0 0
        %487 = vmatprep.subr.bf16.mxu0 0
        %488 = vmatpush1.bf16.msra.mxu0 0
        %489 = vmatprep.subr.bf16.mxu0 0
        %490 = vmatpush1.bf16.msra.mxu0 0
        %491 = vmatprep.subr.bf16.mxu0 0
        %492 = vmatpush1.bf16.msra.mxu0 0
        %493 = vmatprep.subr.bf16.mxu0 0
        %494 = vmatpush1.bf16.msra.mxu0 0
        %495 = vmatprep.subr.bf16.mxu0 0
        %496 = vmatpush1.bf16.msra.mxu0 0
        %497 = vmatprep.subr.bf16.mxu0 0
        %498 = vmatpush1.bf16.msra.mxu0 0
        %499 = vmatprep.subr.bf16.mxu0 0
        %500 = vmatpush1.bf16.msra.mxu0 0
        %501 = vmatprep.subr.bf16.mxu0 0
        %502 = vmatpush1.bf16.msra.mxu0 0
        %503 = vmatprep.subr.bf16.mxu0 0
        %504 = vmatpush1.bf16.msra.mxu0 0
        %505 = vmatprep.mubr.bf16.mxu0 0
        %506 = vmatmul.mubr.bf16.gmra.mrb[0].mxu0 %v471
        %v507 = vpop.f32.mrb[0].mxu0
        %v508 = vadd.f32 0.0, %v507
        %v509 = vpop.f32.mrb[0].mxu0
        %v510 = vpop.f32.mrb[0].mxu0
        %v511 = vpop.f32.mrb[0].mxu0
        %512 = vdwg.mxu0
        %v513 = vadd.f32 %v467, %v508
        %v514 = vxor.u32 %v513, 2147483648
        %v515 = vmul.f32 %v514, 1.442695
        %v516 = vpow.pop %v515
        %v517 = vadd.f32 %v516, 1.0
        %v518 = vrcp.pop %v517
        %v519 = vmul.f32 1.0, %v518
        %v520 = vtanh.pop %v513
        %v521 = vsel %vm209, %v519, %v520
        %v522 = vmul.f32 %v521, %v450
        %524 = vrot.lane.b32.xlu0 %v521, 32
        %v525 = vpop.permute.xlu0 %524
        %v527 = vmul.f32 %v521, %v525
        %529 = vrot.lane.b32.xlu0 %v527, 32
        %v530 = vpop.permute.xlu0 %529
        %v532 = vadd.f32 %v522, %v530
        %v533 = vtanh.pop %v532
        %535 = vrot.lane.b32.xlu0 %v533, 32
        %v536 = vpop.permute.xlu0 %535
        %v538 = vmul.f32 %v521, %v536
        %v539 = vpack.c.bf16 %v538, %v538
        %v541 = vunpack.c.l.b16 %v539
        %v542 = vpack.c.b16 %v541, %v541
        %543 = vrot.lane.b32.xlu0 %v542, 64
        %v544 = vpop.permute.xlu0 %543
        %s546 = scalar_lea.vmem %s201, 12 [#allocation7]
        %547 = vst.msk [vmem:[%s546] sm:$0xf] %vm300, %v544
        %s548 = scalar_lea.vmem %s167, 32 [#allocation2]
        %v549 = vld [vmem:[%s548] sm:$0xff]
        %550 = vrot.lane.b32.xlu0 %v539, 64
        %v551 = vpop.permute.xlu0 %550
        %v553 = vsel %vm223, %v551, 0
        %555 = vmatprep.subr.bf16.mxu0 0
        %556 = vmatpush1.bf16.msra.mxu0 %v219
        %557 = vmatprep.subr.bf16.mxu0 0
        %558 = vmatpush1.bf16.msra.mxu0 %v220
        %559 = vmatprep.subr.bf16.mxu0 0
        %560 = vmatpush1.bf16.msra.mxu0 0
        %561 = vmatprep.subr.bf16.mxu0 0
        %562 = vmatpush1.bf16.msra.mxu0 0
        %563 = vmatprep.subr.bf16.mxu0 0
        %564 = vmatpush1.bf16.msra.mxu0 0
        %565 = vmatprep.subr.bf16.mxu0 0
        %566 = vmatpush1.bf16.msra.mxu0 0
        %567 = vmatprep.subr.bf16.mxu0 0
        %568 = vmatpush1.bf16.msra.mxu0 0
        %569 = vmatprep.subr.bf16.mxu0 0
        %570 = vmatpush1.bf16.msra.mxu0 0
        %571 = vmatprep.subr.bf16.mxu0 0
        %572 = vmatpush1.bf16.msra.mxu0 0
        %573 = vmatprep.subr.bf16.mxu0 0
        %574 = vmatpush1.bf16.msra.mxu0 0
        %575 = vmatprep.subr.bf16.mxu0 0
        %576 = vmatpush1.bf16.msra.mxu0 0
        %577 = vmatprep.subr.bf16.mxu0 0
        %578 = vmatpush1.bf16.msra.mxu0 0
        %579 = vmatprep.subr.bf16.mxu0 0
        %580 = vmatpush1.bf16.msra.mxu0 0
        %581 = vmatprep.subr.bf16.mxu0 0
        %582 = vmatpush1.bf16.msra.mxu0 0
        %583 = vmatprep.subr.bf16.mxu0 0
        %584 = vmatpush1.bf16.msra.mxu0 0
        %585 = vmatprep.subr.bf16.mxu0 0
        %586 = vmatpush1.bf16.msra.mxu0 0
        %587 = vmatprep.mubr.bf16.mxu0 0
        %588 = vmatmul.mubr.bf16.gmra.mrb[0].mxu0 %v553
        %v589 = vpop.f32.mrb[0].mxu0
        %v590 = vadd.f32 0.0, %v589
        %v591 = vpop.f32.mrb[0].mxu0
        %v592 = vpop.f32.mrb[0].mxu0
        %v593 = vpop.f32.mrb[0].mxu0
        %594 = vdwg.mxu0
        %v595 = vadd.f32 %v549, %v590
        %v596 = vxor.u32 %v595, 2147483648
        %v597 = vmul.f32 %v596, 1.442695
        %v598 = vpow.pop %v597
        %v599 = vadd.f32 %v598, 1.0
        %v600 = vrcp.pop %v599
        %v601 = vmul.f32 1.0, %v600
        %v602 = vtanh.pop %v595
        %v603 = vsel %vm209, %v601, %v602
        %v604 = vmul.f32 %v603, %v532
        %606 = vrot.lane.b32.xlu0 %v603, 32
        %v607 = vpop.permute.xlu0 %606
        %v609 = vmul.f32 %v603, %v607
        %611 = vrot.lane.b32.xlu0 %v609, 32
        %v612 = vpop.permute.xlu0 %611
        %v614 = vadd.f32 %v604, %v612
        %v615 = vtanh.pop %v614
        %617 = vrot.lane.b32.xlu0 %v615, 32
        %v618 = vpop.permute.xlu0 %617
        %v620 = vmul.f32 %v603, %v618
        %v621 = vpack.c.bf16 %v620, %v620
        %v623 = vunpack.c.l.b16 %v621
        %v624 = vpack.c.b16 %v623, %v623
        %625 = vrot.lane.b32.xlu0 %v624, 64
        %v626 = vpop.permute.xlu0 %625
        %s628 = scalar_lea.vmem %s201, 16 [#allocation7]
        %629 = vst.msk [vmem:[%s628] sm:$0xf] %vm300, %v626
        %s630 = scalar_lea.vmem %s167, 40 [#allocation2]
        %v631 = vld [vmem:[%s630] sm:$0xff]
        %632 = vrot.lane.b32.xlu0 %v621, 64
        %v633 = vpop.permute.xlu0 %632
        %v635 = vsel %vm223, %v633, 0
        %637 = vmatprep.subr.bf16.mxu0 0
        %638 = vmatpush1.bf16.msra.mxu0 %v219
        %639 = vmatprep.subr.bf16.mxu0 0
        %640 = vmatpush1.bf16.msra.mxu0 %v220
        %641 = vmatprep.subr.bf16.mxu0 0
        %642 = vmatpush1.bf16.msra.mxu0 0
        %643 = vmatprep.subr.bf16.mxu0 0
        %644 = vmatpush1.bf16.msra.mxu0 0
        %645 = vmatprep.subr.bf16.mxu0 0
        %646 = vmatpush1.bf16.msra.mxu0 0
        %647 = vmatprep.subr.bf16.mxu0 0
        %648 = vmatpush1.bf16.msra.mxu0 0
        %649 = vmatprep.subr.bf16.mxu0 0
        %650 = vmatpush1.bf16.msra.mxu0 0
        %651 = vmatprep.subr.bf16.mxu0 0
        %652 = vmatpush1.bf16.msra.mxu0 0
        %653 = vmatprep.subr.bf16.mxu0 0
        %654 = vmatpush1.bf16.msra.mxu0 0
        %655 = vmatprep.subr.bf16.mxu0 0
        %656 = vmatpush1.bf16.msra.mxu0 0
        %657 = vmatprep.subr.bf16.mxu0 0
        %658 = vmatpush1.bf16.msra.mxu0 0
        %659 = vmatprep.subr.bf16.mxu0 0
        %660 = vmatpush1.bf16.msra.mxu0 0
        %661 = vmatprep.subr.bf16.mxu0 0
        %662 = vmatpush1.bf16.msra.mxu0 0
        %663 = vmatprep.subr.bf16.mxu0 0
        %664 = vmatpush1.bf16.msra.mxu0 0
        %665 = vmatprep.subr.bf16.mxu0 0
        %666 = vmatpush1.bf16.msra.mxu0 0
        %667 = vmatprep.subr.bf16.mxu0 0
        %668 = vmatpush1.bf16.msra.mxu0 0
        %669 = vmatprep.mubr.bf16.mxu0 0
        %670 = vmatmul.mubr.bf16.gmra.mrb[0].mxu0 %v635
        %v671 = vpop.f32.mrb[0].mxu0
        %v672 = vadd.f32 0.0, %v671
        %v673 = vpop.f32.mrb[0].mxu0
        %v674 = vpop.f32.mrb[0].mxu0
        %v675 = vpop.f32.mrb[0].mxu0
        %676 = vdwg.mxu0
        %v677 = vadd.f32 %v631, %v672
        %v678 = vxor.u32 %v677, 2147483648
        %v679 = vmul.f32 %v678, 1.442695
        %v680 = vpow.pop %v679
        %v681 = vadd.f32 %v680, 1.0
        %v682 = vrcp.pop %v681
        %v683 = vmul.f32 1.0, %v682
        %v684 = vtanh.pop %v677
        %v685 = vsel %vm209, %v683, %v684
        %v686 = vmul.f32 %v685, %v614
        %688 = vrot.lane.b32.xlu0 %v685, 32
        %v689 = vpop.permute.xlu0 %688
        %v691 = vmul.f32 %v685, %v689
        %693 = vrot.lane.b32.xlu0 %v691, 32
        %v694 = vpop.permute.xlu0 %693
        %v696 = vadd.f32 %v686, %v694
        %v697 = vtanh.pop %v696
        %699 = vrot.lane.b32.xlu0 %v697, 32
        %v700 = vpop.permute.xlu0 %699
        %v702 = vmul.f32 %v685, %v700
        %v703 = vpack.c.bf16 %v702, %v702
        %v705 = vunpack.c.l.b16 %v703
        %v706 = vpack.c.b16 %v705, %v705
        %707 = vrot.lane.b32.xlu0 %v706, 64
        %v708 = vpop.permute.xlu0 %707
        %s710 = scalar_lea.vmem %s201, 20 [#allocation7]
        %711 = vst.msk [vmem:[%s710] sm:$0xf] %vm300, %v708
        %s712 = scalar_lea.vmem %s167, 48 [#allocation2]
        %v713 = vld [vmem:[%s712] sm:$0xff]
        %714 = vrot.lane.b32.xlu0 %v703, 64
        %v715 = vpop.permute.xlu0 %714
        %v717 = vsel %vm223, %v715, 0
        %719 = vmatprep.subr.bf16.mxu0 0
        %720 = vmatpush1.bf16.msra.mxu0 %v219
        %721 = vmatprep.subr.bf16.mxu0 0
        %722 = vmatpush1.bf16.msra.mxu0 %v220
        %723 = vmatprep.subr.bf16.mxu0 0
        %724 = vmatpush1.bf16.msra.mxu0 0
        %725 = vmatprep.subr.bf16.mxu0 0
        %726 = vmatpush1.bf16.msra.mxu0 0
        %727 = vmatprep.subr.bf16.mxu0 0
        %728 = vmatpush1.bf16.msra.mxu0 0
        %729 = vmatprep.subr.bf16.mxu0 0
        %730 = vmatpush1.bf16.msra.mxu0 0
        %731 = vmatprep.subr.bf16.mxu0 0
        %732 = vmatpush1.bf16.msra.mxu0 0
        %733 = vmatprep.subr.bf16.mxu0 0
        %734 = vmatpush1.bf16.msra.mxu0 0
        %735 = vmatprep.subr.bf16.mxu0 0
        %736 = vmatpush1.bf16.msra.mxu0 0
        %737 = vmatprep.subr.bf16.mxu0 0
        %738 = vmatpush1.bf16.msra.mxu0 0
        %739 = vmatprep.subr.bf16.mxu0 0
        %740 = vmatpush1.bf16.msra.mxu0 0
        %741 = vmatprep.subr.bf16.mxu0 0
        %742 = vmatpush1.bf16.msra.mxu0 0
        %743 = vmatprep.subr.bf16.mxu0 0
        %744 = vmatpush1.bf16.msra.mxu0 0
        %745 = vmatprep.subr.bf16.mxu0 0
        %746 = vmatpush1.bf16.msra.mxu0 0
        %747 = vmatprep.subr.bf16.mxu0 0
        %748 = vmatpush1.bf16.msra.mxu0 0
        %749 = vmatprep.subr.bf16.mxu0 0
        %750 = vmatpush1.bf16.msra.mxu0 0
        %751 = vmatprep.mubr.bf16.mxu0 0
        %752 = vmatmul.mubr.bf16.gmra.mrb[0].mxu0 %v717
        %v753 = vpop.f32.mrb[0].mxu0
        %v754 = vadd.f32 0.0, %v753
        %v755 = vpop.f32.mrb[0].mxu0
        %v756 = vpop.f32.mrb[0].mxu0
        %v757 = vpop.f32.mrb[0].mxu0
        %758 = vdwg.mxu0
        %v759 = vadd.f32 %v713, %v754
        %v760 = vxor.u32 %v759, 2147483648
        %v761 = vmul.f32 %v760, 1.442695
        %v762 = vpow.pop %v761
        %v763 = vadd.f32 %v762, 1.0
        %v764 = vrcp.pop %v763
        %v765 = vmul.f32 1.0, %v764
        %v766 = vtanh.pop %v759
        %v767 = vsel %vm209, %v765, %v766
        %v768 = vmul.f32 %v767, %v696
        %770 = vrot.lane.b32.xlu0 %v767, 32
        %v771 = vpop.permute.xlu0 %770
        %v773 = vmul.f32 %v767, %v771
        %775 = vrot.lane.b32.xlu0 %v773, 32
        %v776 = vpop.permute.xlu0 %775
        %v778 = vadd.f32 %v768, %v776
        %v779 = vtanh.pop %v778
        %781 = vrot.lane.b32.xlu0 %v779, 32
        %v782 = vpop.permute.xlu0 %781
        %v784 = vmul.f32 %v767, %v782
        %v785 = vpack.c.bf16 %v784, %v784
        %v787 = vunpack.c.l.b16 %v785
        %v788 = vpack.c.b16 %v787, %v787
        %789 = vrot.lane.b32.xlu0 %v788, 64
        %v790 = vpop.permute.xlu0 %789
        %s792 = scalar_lea.vmem %s201, 24 [#allocation7]
        %793 = vst.msk [vmem:[%s792] sm:$0xf] %vm300, %v790
        %s794 = scalar_lea.vmem %s167, 56 [#allocation2]
        %v795 = vld [vmem:[%s794] sm:$0xff]
        %796 = vrot.lane.b32.xlu0 %v785, 64
        %v797 = vpop.permute.xlu0 %796
        %v799 = vsel %vm223, %v797, 0
        %801 = vmatprep.subr.bf16.mxu0 0
        %802 = vmatpush1.bf16.msra.mxu0 %v219
        %803 = vmatprep.subr.bf16.mxu0 0
        %804 = vmatpush1.bf16.msra.mxu0 %v220
        %805 = vmatprep.subr.bf16.mxu0 0
        %806 = vmatpush1.bf16.msra.mxu0 0
        %807 = vmatprep.subr.bf16.mxu0 0
        %808 = vmatpush1.bf16.msra.mxu0 0
        %809 = vmatprep.subr.bf16.mxu0 0
        %810 = vmatpush1.bf16.msra.mxu0 0
        %811 = vmatprep.subr.bf16.mxu0 0
        %812 = vmatpush1.bf16.msra.mxu0 0
        %813 = vmatprep.subr.bf16.mxu0 0
        %814 = vmatpush1.bf16.msra.mxu0 0
        %815 = vmatprep.subr.bf16.mxu0 0
        %816 = vmatpush1.bf16.msra.mxu0 0
        %817 = vmatprep.subr.bf16.mxu0 0
        %818 = vmatpush1.bf16.msra.mxu0 0
        %819 = vmatprep.subr.bf16.mxu0 0
        %820 = vmatpush1.bf16.msra.mxu0 0
        %821 = vmatprep.subr.bf16.mxu0 0
        %822 = vmatpush1.bf16.msra.mxu0 0
        %823 = vmatprep.subr.bf16.mxu0 0
        %824 = vmatpush1.bf16.msra.mxu0 0
        %825 = vmatprep.subr.bf16.mxu0 0
        %826 = vmatpush1.bf16.msra.mxu0 0
        %827 = vmatprep.subr.bf16.mxu0 0
        %828 = vmatpush1.bf16.msra.mxu0 0
        %829 = vmatprep.subr.bf16.mxu0 0
        %830 = vmatpush1.bf16.msra.mxu0 0
        %831 = vmatprep.subr.bf16.mxu0 0
        %832 = vmatpush1.bf16.msra.mxu0 0
        %833 = vmatprep.mubr.bf16.mxu0 0
        %834 = vmatmul.mubr.bf16.gmra.mrb[0].mxu0 %v799
        %v835 = vpop.f32.mrb[0].mxu0
        %v836 = vadd.f32 0.0, %v835
        %v837 = vpop.f32.mrb[0].mxu0
        %v838 = vpop.f32.mrb[0].mxu0
        %v839 = vpop.f32.mrb[0].mxu0
        %840 = vdwg.mxu0
        %v841 = vadd.f32 %v795, %v836
        %v842 = vxor.u32 %v841, 2147483648
        %v843 = vmul.f32 %v842, 1.442695
        %v844 = vpow.pop %v843
        %v845 = vadd.f32 %v844, 1.0
        %v846 = vrcp.pop %v845
        %v847 = vmul.f32 1.0, %v846
        %v848 = vtanh.pop %v841
        %v849 = vsel %vm209, %v847, %v848
        %v850 = vmul.f32 %v849, %v778
        %852 = vrot.lane.b32.xlu0 %v849, 32
        %v853 = vpop.permute.xlu0 %852
        %v855 = vmul.f32 %v849, %v853
        %857 = vrot.lane.b32.xlu0 %v855, 32
        %v858 = vpop.permute.xlu0 %857
        %v860 = vadd.f32 %v850, %v858
        %v861 = vtanh.pop %v860
        %863 = vrot.lane.b32.xlu0 %v861, 32
        %v864 = vpop.permute.xlu0 %863
        %v866 = vmul.f32 %v849, %v864
        %v867 = vpack.c.bf16 %v866, %v866
        %v869 = vunpack.c.l.b16 %v867
        %v870 = vpack.c.b16 %v869, %v869
        %871 = vrot.lane.b32.xlu0 %v870, 64
        %v872 = vpop.permute.xlu0 %871
        %s874 = scalar_lea.vmem %s201, 28 [#allocation7]
        %875 = vst.msk [vmem:[%s874] sm:$0xf] %vm300, %v872
        %s876 = sand.u32 %s82, 1
        %s877 = scalar_lea.sflag [#allocation4], %s876
        %s878 = sand.u32 %s82, 1
        %s879 = smul.addr %s878, 32
        %s880 = scalar_lea.vmem [#allocation7], %s879
        // Predicated region
        $region37: #{mask_lstm.1} parent=27 // pred_check
          %p881 = pneg %p92
        $region38: #{mask_lstm.1} parent=27 // pred_check_branch
          %883 = sbr.rel (%p881) target = $region40
        $region39: #{mask_lstm.1} parent=27 // pred_region
          %s885 = ssub.s32 512, 512
          %886 = vsyncadd %s877, %s885
          %s887 = smul.addr %s22, 8
          %s888 = smul.addr %s887, 64
          %s889 = scalar_lea.hbm %s2, %s888
          %s890 = sshll.u32 %s880, 4
          %s891 = int_to_ptr.vmem [resolvable:$true] %s890
          %896 = dma.vmem_to_hbm [thread:$0]  %s891, 512, %s889, %s877, 64, 64, 4
        $region40: #{mask_lstm.1} parent=27 // pred_fallthru
          _
      $region28: #{mask_lstm.1} parent=5 // pred_fallthru
        _
      %p897 = scmp.le.s32.totalorder 2, %s17
      // Predicated region
      $region41: #{mask_lstm.1} parent=5 // pred_check
        %p898 = pneg %p897
      $region42: #{mask_lstm.1} parent=5 // pred_check_branch
        %900 = sbr.rel (%p898) target = $region44
      $region43: #{mask_lstm.1} parent=5 // pred_region
        %s901 = ssub.s32 %s17, 2
        // Predicated region
        $region45: #{mask_lstm.1} parent=43 // pred_check
          %p902 = pneg %p98
        $region46: #{mask_lstm.1} parent=43 // pred_check_branch
          %904 = sbr.rel (%p902) target = $region48
        $region47: #{mask_lstm.1} parent=43 // pred_region
          %s905 = sand.u32 %s83, 1
          %s906 = scalar_lea.sflag [#allocation4], %s905
          %s907 = sand.u32 %s83, 1
          %s908 = smul.addr %s907, 32
          %s909 = scalar_lea.vmem [#allocation7], %s908
          %910 = dma.done %s906, 512
        $region48: #{mask_lstm.1} parent=43 // pred_fallthru
          _
      $region44: #{mask_lstm.1} parent=5 // pred_fallthru
        _
    $region6: #{mask_lstm.1} parent=1 // loop_footer
      %s21 = sadd.s32 1, %s17
    $region7: #{mask_lstm.1} parent=1 // loop_footer_branch
      %16 = sbr.rel target = $region3
    $region8: #{mask_lstm.1} parent=1 // loop_exit
      _
    %911 = vsyncpa [#allocation3], 1
    %s912 = scalar_lea.sflag [#allocation3], 1
    %913 = vsyncpa %s912, 1
    %914 = vsyncpa [#allocation6], 1
    %s915 = scalar_lea.sflag [#allocation6], 1
    %916 = vsyncpa %s915, 1
    %917 = vsyncpa [#allocation4], 1
    %s918 = scalar_lea.sflag [#allocation4], 1
    %919 = vsyncpa %s918, 1

</llo_original>
